<compile_context>
chip_gen: v7x
topology: tpu7x:2x2x1
jax: 0.10.0
libtpu: 0.0.40
codegen_flags: <defaults>
</compile_context>

<pallas_src>
from functools import partial
from math import sqrt
from typing import NamedTuple

import jax
import jax.numpy as jnp
from jax.experimental import pallas as pl
from jax.experimental.pallas import tpu as pltpu


# ----------------------------------------------------------------------------- helpers
def _round_up(x: int, m: int) -> int:
    return ((x + m - 1) // m) * m


def _sublane_multiple(dtype) -> int:
    # f32 -> 8, bf16 -> 16, int8/fp8 -> 32 (packed sublane tiling).
    return {4: 8, 2: 16, 1: 32}[jnp.dtype(dtype).itemsize]


def _tpu_generation():
    try:
        kind = jax.devices()[0].device_kind.lower()
    except Exception:
        return None
    for tag in ("v7", "v6", "v5", "v4"):
        if tag in kind:
            return tag
    return None


def _default_config():
    gen = _tpu_generation()
    if gen == "v7":   # 64 MiB VMEM / TC, 2 TCs, 2x256^2 bf16 MXU
        return dict(vmem_limit=48 * 1024 * 1024, lane_pref=256, tm=512, tn=512, tk=512)
    if gen == "v6":   # 128 MiB VMEM, 2x256^2 bf16 MXU
        return dict(vmem_limit=64 * 1024 * 1024, lane_pref=256, tm=512, tn=512, tk=512)
    if gen in ("v5", "v4"):   # 128 MiB VMEM, 128^2 MXU -> 128 alignment suffices
        return dict(vmem_limit=64 * 1024 * 1024, lane_pref=128, tm=512, tn=512, tk=512)
    # Unknown backend (e.g. interpret): conservative.
    return dict(vmem_limit=32 * 1024 * 1024, lane_pref=128, tm=256, tn=256, tk=256)


def _pick_tile(dim: int, max_tile: int, pref_align: int) -> int:
    """Largest multiple of pref_align (falling back to 128) that divides `dim`
    and is <= max_tile.  `dim` is always a multiple of 128."""
    for align in (pref_align, 128):
        best, t = 0, align
        while t <= min(dim, max_tile):
            if dim % t == 0:
                best = t
            t += align
        if best:
            return best
    return 128


# ----------------------------------------------------------------------------- params (hoisted prep)
class EqualLinearParams(NamedTuple):
    w_kn: jax.Array   # (Kp, Np), compute dtype, EqualLR scale folded, zero padded
    bias: jax.Array   # (1, Np), float32, zero padded
    in_dim: int
    out_dim: int


def prepare_equal_linear(weight, bias, *, compute_dtype=None) -> EqualLinearParams:
    """Fold the EqualLR runtime scale sqrt(2 / fan_in) into the PyTorch-layout
    (out_dim, in_dim) weight, transpose to the (K, N) matmul operand, cast to
    the compute dtype and zero-pad K, N up to lane multiples.  Done ONCE."""
    out_dim, in_dim = weight.shape
    assert bias.shape == (out_dim,)
    if compute_dtype is None:
        compute_dtype = weight.dtype
    scale = sqrt(2.0 / in_dim)            # fan_in = in_dim for nn.Linear
    w_kn = (weight.astype(jnp.float32) * scale).T.astype(compute_dtype)  # (K, N)
    kp = _round_up(in_dim, 128)
    np_ = _round_up(out_dim, 128)
    if (kp, np_) != (in_dim, out_dim):
        # Zero-padded K rows guarantee padded K columns of x contribute nothing.
        w_kn = jnp.pad(w_kn, ((0, kp - in_dim), (0, np_ - out_dim)))
    b = jnp.pad(bias.astype(jnp.float32), (0, np_ - out_dim)).reshape(1, np_)
    return EqualLinearParams(w_kn=w_kn, bias=b, in_dim=in_dim, out_dim=out_dim)


# ----------------------------------------------------------------------------- kernels
def _collapsed_kernel(x_ref, w_ref, b_ref, o_ref, *, compute_dtype):
    # Single K/N block: whole weight VMEM resident, bias fused into the store.
    o_ref[...] = (jnp.dot(x_ref[...].astype(compute_dtype), w_ref[...],
                          preferred_element_type=jnp.float32)
                  + b_ref[...]).astype(o_ref.dtype)


def _acc_into_out_kernel(x_ref, w_ref, b_ref, o_ref, *, compute_dtype):
    # 3-D grid, float32 output: accumulate straight into the resident o tile
    # (no scratch, no zero-init pass, no finalize copy).
    @pl.when(pl.program_id(2) == 0)
    def _init():
        o_ref[...] = jnp.broadcast_to(b_ref[...], o_ref.shape)

    o_ref[...] += jnp.dot(x_ref[...].astype(compute_dtype), w_ref[...],
                          preferred_element_type=jnp.float32)


def _acc_scratch_kernel(x_ref, w_ref, b_ref, o_ref, acc_ref, *, compute_dtype):
    # 3-D grid, narrow output dtype: f32 VMEM accumulator, cast on last k step.
    @pl.when(pl.program_id(2) == 0)
    def _init():
        acc_ref[...] = jnp.broadcast_to(b_ref[...], acc_ref.shape)

    acc_ref[...] += jnp.dot(x_ref[...].astype(compute_dtype), w_ref[...],
                            preferred_element_type=jnp.float32)

    @pl.when(pl.program_id(2) == pl.num_programs(2) - 1)
    def _finalize():
        o_ref[...] = acc_ref[...].astype(o_ref.dtype)


# ----------------------------------------------------------------------------- pallas_call wrapper
@partial(jax.jit,
         static_argnames=("out_dim", "tm", "tn", "tk", "vmem_limit", "lane_pref"))
def _equal_linear_impl(x, w_kn, bias2d, *, out_dim, tm, tn, tk,
                       vmem_limit, lane_pref):
    M, K = x.shape
    Kp, Np = w_kn.shape
    assert Kp >= K and Np >= out_dim
    compute_dtype = w_kn.dtype
    out_dtype = x.dtype

    m_sub = _sublane_multiple(x.dtype)
    TM = max(m_sub, _round_up(min(tm, _round_up(M, m_sub)), m_sub))
    Mp = _round_up(M, TM)
    # Pad x only when needed (zero-padded K columns hit zero weight rows).
    x_in = x if (Mp, Kp) == (M, K) else jnp.pad(x, ((0, Mp - M), (0, Kp - K)))

    w_bytes = Kp * Np * jnp.dtype(compute_dtype).itemsize
    x_bytes = Mp * Kp * x.dtype.itemsize
    o_bytes = Mp * Np * jnp.dtype(out_dtype).itemsize

    # Collapsed 1-D-grid fast path: whole (Kp, Np) weight stays VMEM resident.
    # This is where nearly every real EqualLinear call lives (AdaIN style
    # projections, 512x512 mapping-network layers).
    collapse = Kp <= 2048 and Np <= 2048 and w_bytes <= 8 * 1024 * 1024

    if collapse:
        out = pl.pallas_call(
            partial(_collapsed_kernel, compute_dtype=compute_dtype),
            out_shape=jax.ShapeDtypeStruct((Mp, Np), out_dtype),
            grid_spec=pltpu.PrefetchScalarGridSpec(
                num_scalar_prefetch=0,
                grid=(Mp // TM,),
                in_specs=[
                    pl.BlockSpec((TM, Kp), lambda i: (i, 0)),   # x tile
                    pl.BlockSpec((Kp, Np), lambda i: (0, 0)),   # whole weight
                    pl.BlockSpec((1, Np), lambda i: (0, 0)),    # bias row
                ],
                out_specs=pl.BlockSpec((TM, Np), lambda i: (i, 0)),
            ),
            compiler_params=pltpu.CompilerParams(
                dimension_semantics=("parallel",),
                vmem_limit_bytes=vmem_limit),
            cost_estimate=pl.CostEstimate(
                flops=2 * Mp * Np * Kp, transcendentals=0,
                bytes_accessed=x_bytes + w_bytes + o_bytes),
        )(x_in, w_kn, bias2d)
    else:
        TN = _pick_tile(Np, tn, lane_pref)
        TK = _pick_tile(Kp, tk, lane_pref)
        grid = (Mp // TM, Np // TN, Kp // TK)
        acc_into_out = out_dtype == jnp.float32
        kern = _acc_into_out_kernel if acc_into_out else _acc_scratch_kernel
        scratch = () if acc_into_out else (pltpu.VMEM((TM, TN), jnp.float32),)
        out = pl.pallas_call(
            partial(kern, compute_dtype=compute_dtype),
            out_shape=jax.ShapeDtypeStruct((Mp, Np), out_dtype),
            grid_spec=pltpu.PrefetchScalarGridSpec(
                num_scalar_prefetch=0,
                grid=grid,
                in_specs=[
                    pl.BlockSpec((TM, TK), lambda i, j, k: (i, k)),   # x tile
                    pl.BlockSpec((TK, TN), lambda i, j, k: (k, j)),   # w tile
                    pl.BlockSpec((1, TN), lambda i, j, k: (0, j)),    # bias tile
                ],
                out_specs=pl.BlockSpec((TM, TN), lambda i, j, k: (i, j)),
                scratch_shapes=list(scratch),
            ),
            compiler_params=pltpu.CompilerParams(
                dimension_semantics=("parallel", "parallel", "arbitrary"),
                vmem_limit_bytes=vmem_limit),
            cost_estimate=pl.CostEstimate(
                flops=2 * Mp * Np * Kp, transcendentals=0,
                bytes_accessed=((Np // TN) * x_bytes + (Mp // TM) * w_bytes
                                + o_bytes)),
        )(x_in, w_kn, bias2d)

    if (Mp, Np) != (M, out_dim):
        out = out[:M, :out_dim]
    return out


def equal_linear_pallas(x, params: EqualLinearParams, *, tm=None, tn=None, tk=None):
    """EqualLinear forward: y = x @ w_kn + bias with params from
    prepare_equal_linear().  x: (M, in_dim)."""
    assert x.ndim == 2 and x.shape[1] == params.in_dim
    cfg = _default_config()
    return _equal_linear_impl(
        x, params.w_kn, params.bias,
        out_dim=params.out_dim,
        tm=tm or cfg["tm"], tn=tn or cfg["tn"], tk=tk or cfg["tk"],
        vmem_limit=cfg["vmem_limit"], lane_pref=cfg["lane_pref"])


def equal_linear(x, weight, bias, *, compute_dtype=None, **tile_kw):
    """Drop-in equivalent of PyTorch EqualLinear.forward(input).
    Prefer prepare_equal_linear() once + equal_linear_pallas() in a model;
    this convenience wrapper re-folds / re-pads the weight on every call."""
    return equal_linear_pallas(
        x, prepare_equal_linear(weight, bias, compute_dtype=compute_dtype),
        **tile_kw)


# ----------------------------------------------------------------------------- demo / self-test
if __name__ == "__main__":
    key = jax.random.PRNGKey(0)
    k1, k2, k3, k4, k5, k6, k7, k8 = jax.random.split(key, 8)

    # 1) Canonical small EqualLinear (StyleGAN AdaIN style projection):
    #    collapsed 1-D-grid path, grid=(1,), whole weight VMEM resident.
    batch, in_dim, out_dim = 2, 32, 64
    x = jax.random.normal(k1, (batch, in_dim), jnp.float32)
    weight = jax.random.normal(k2, (out_dim, in_dim), jnp.float32)   # .normal_()
    bias = jnp.zeros((out_dim,), jnp.float32)                        # .zero_()
    params = prepare_equal_linear(weight, bias)                      # folded ONCE
    y = jax.block_until_ready(equal_linear_pallas(x, params))
    ref = x @ (weight.T * sqrt(2.0 / in_dim)) + bias
    assert y.shape == (batch, out_dim) and y.dtype == jnp.float32, y.shape
    assert jnp.allclose(y, ref, atol=2e-2, rtol=2e-2), \
        float(jnp.max(jnp.abs(y - ref)))

    # 2) Mapping-network-style layer with ragged dims and bf16 operands
    #    (x is cast to bf16 inside the kernel; f32 MXU accumulation kept).
    M2, K2, N2 = 512, 384, 320
    x2 = jax.random.normal(k3, (M2, K2), jnp.float32)
    w2 = jax.random.normal(k4, (N2, K2), jnp.float32)
    b2 = jax.random.normal(k5, (N2,), jnp.float32)
    p2 = prepare_equal_linear(w2, b2, compute_dtype=jnp.bfloat16)
    y2 = jax.block_until_ready(equal_linear_pallas(x2, p2))
    w2_kn = (w2.T * sqrt(2.0 / K2)).astype(jnp.bfloat16).astype(jnp.float32)
    ref2 = x2.astype(jnp.bfloat16).astype(jnp.float32) @ w2_kn + b2
    assert y2.shape == (M2, N2) and y2.dtype == jnp.float32, y2.shape
    assert jnp.allclose(y2, ref2, atol=5e-2, rtol=5e-2), \
        float(jnp.max(jnp.abs(y2 - ref2)))

    # 3) Large-K layer exercising the tiled 3-D grid (K reduction) path with
    #    direct accumulation into the resident f32 output tile.
    M3, K3, N3 = 256, 2304, 512
    x3 = jax.random.normal(k6, (M3, K3), jnp.float32)
    w3 = jax.random.normal(k7, (N3, K3), jnp.float32)
    b3 = jax.random.normal(k8, (N3,), jnp.float32)
    p3 = prepare_equal_linear(w3, b3)
    y3 = jax.block_until_ready(equal_linear_pallas(x3, p3))
    ref3 = x3 @ (w3.T * sqrt(2.0 / K3)) + b3
    assert y3.shape == (M3, N3) and y3.dtype == jnp.float32, y3.shape
    assert jnp.allclose(y3, ref3, atol=5e-2, rtol=5e-2), \
        float(jnp.max(jnp.abs(y3 - ref3)))

    print("KERNEL_OK")
</pallas_src>

<mosaic_0001>
module attributes {stable_mosaic.version = 11 : i64} {
  func.func @_collapsed_kernel(%arg0: i32, %arg1: memref<8x128xf32, #tpu.memory_space<vmem>>, %arg2: memref<128x128xf32, #tpu.memory_space<vmem>>, %arg3: memref<1x128xf32, #tpu.memory_space<vmem>>, %arg4: memref<8x128xf32, #tpu.memory_space<vmem>>) attributes {dimension_semantics = [#tpu.dimension_semantics<parallel>], iteration_bounds = array<i64: 1>, scalar_prefetch = 0 : i64, scratch_operands = 0 : i64, tpu.core_type = #tpu.core_type<tc>, window_params = [{transform_indices = @transform_0, window_bounds = array<i64: 8, 128>}, {pipeline_mode = #tpu.pipeline_mode<synchronous>, transform_indices = @transform_1, window_bounds = array<i64: 128, 128>}, {pipeline_mode = #tpu.pipeline_mode<synchronous>, transform_indices = @transform_2, window_bounds = array<i64: 1, 128>}, {transform_indices = @transform_3, window_bounds = array<i64: 8, 128>}]} {
    %c0 = arith.constant 0 : index
    %c0_0 = arith.constant 0 : index
    %0 = vector.load %arg1[%c0, %c0_0] : memref<8x128xf32, #tpu.memory_space<vmem>>, vector<8x128xf32>
    %c0_1 = arith.constant 0 : index
    %c0_2 = arith.constant 0 : index
    %1 = vector.load %arg2[%c0_1, %c0_2] : memref<128x128xf32, #tpu.memory_space<vmem>>, vector<128x128xf32>
    %cst = arith.constant dense<0.000000e+00> : vector<8x128xf32>
    %2 = tpu.matmul %0, %1, %cst {dimension_numbers = #tpu.dot_dimension_numbers<[1], [0], [0], [1], [0, 0, 1, 1], [], []>} : vector<8x128xf32>, vector<128x128xf32>, vector<8x128xf32> -> vector<8x128xf32>
    %c0_3 = arith.constant 0 : index
    %c0_4 = arith.constant 0 : index
    %3 = vector.load %arg3[%c0_3, %c0_4] : memref<1x128xf32, #tpu.memory_space<vmem>>, vector<1x128xf32>
    %4 = vector.broadcast %3 : vector<1x128xf32> to vector<8x128xf32>
    %5 = arith.addf %2, %4 : vector<8x128xf32>
    %c0_5 = arith.constant 0 : index
    %c0_6 = arith.constant 0 : index
    %6 = vector.load %arg4[%c0_5, %c0_6] : memref<8x128xf32, #tpu.memory_space<vmem>>, vector<8x128xf32>
    tpu.vector_store %arg4[%c0_5, %c0_6], %5 {strides = array<i32>} : memref<8x128xf32, #tpu.memory_space<vmem>>, vector<8x128xf32>,
    return
  }
  func.func @transform_0(%arg0: i32) -> (i32, i32) {
    %c0_i32 = arith.constant 0 : i32
    %c0_i32_0 = arith.constant 0 : i32
    return %arg0, %c0_i32 : i32, i32
  }
  func.func @transform_1(%arg0: i32) -> (i32, i32) {
    %c0_i32 = arith.constant 0 : i32
    %c0_i32_0 = arith.constant 0 : i32
    %c0_i32_1 = arith.constant 0 : i32
    return %c0_i32, %c0_i32_0 : i32, i32
  }
  func.func @transform_2(%arg0: i32) -> (i32, i32) {
    %c0_i32 = arith.constant 0 : i32
    %c0_i32_0 = arith.constant 0 : i32
    %c0_i32_1 = arith.constant 0 : i32
    return %c0_i32, %c0_i32_0 : i32, i32
  }
  func.func @transform_3(%arg0: i32) -> (i32, i32) {
    %c0_i32 = arith.constant 0 : i32
    %c0_i32_0 = arith.constant 0 : i32
    return %arg0, %c0_i32 : i32, i32
  }
}

</mosaic_0001>

<llo_original>
// kernel: _equal_linear_impl.1
$region0: #{_equal_linear_impl.1}
  #allocation0 [shape = 'u32[]', space=smem, size = 0x4, offset = 0x4, fixed_abs, tag = 'smem constant byte address 0x4 - core index']
  #allocation1 [shape = 'u32[144,128]{1,0:T(1,128)}', space=vmem, size = 0x12000, scoped, tag = 'internal scratch']
  %s0 = inlined_call_operand.vmem [shape: f32[8,128], index: 0, kind: input, shape index: {}]
  %s1 = inlined_call_operand.hbm [shape: f32[128,128], index: 1, kind: input, shape index: {}]
  %s2 = inlined_call_operand.vmem [shape: f32[1,128], index: 2, kind: input, shape index: {}]
  %s3 = inlined_call_operand.vmem [shape: f32[8,128], index: 3, kind: output, shape index: {}]
  %s4 = sld [smem:[#allocation0]]
  $region26: #{_equal_linear_impl.1} parent=0
    _
  %s6 = ssub.s32 1, %s4
  %s7 = scalar_select 0, %s6, %s4
  $region1: #{_equal_linear_impl.1} parent=0
    #allocation2 [shape = 'u8[65536]{0}', space=vmem, size = 0x10000, scoped, tag = 'input window, operand 1, single buffered']
    #allocation3 [shape = 's32[1]{0}', space=sflag, size = 0x4, scoped, tag = 'scoped memory for _equal_linear_impl.1']
    %8 = vsyncpa [#allocation3], 0
    // Predicated region
    $region2: #{_equal_linear_impl.1} parent=1 // pred_check
      _
    $region3: #{_equal_linear_impl.1} parent=1 // pred_check_branch
      %10 = sbr.rel (0) target = $region5
    $region4: #{_equal_linear_impl.1} parent=1 // pred_region
      _
    $region5: #{_equal_linear_impl.1} parent=1 // pred_fallthru
      _
    // Predicated region
    $region6: #{_equal_linear_impl.1} parent=1 // pred_check
      _
    $region7: #{_equal_linear_impl.1} parent=1 // pred_check_branch
      %12 = sbr.rel (0) target = $region9
    $region8: #{_equal_linear_impl.1} parent=1 // pred_region
      %s14 = ssub.s32 2048, 2048
      %15 = vsyncadd [#allocation3], %s14
      %s16 = sshll.u32 [#allocation2], 4
      %s17 = int_to_ptr.vmem [resolvable:$true] %s16
      %22 = dma.hbm_to_vmem [thread:$0]  %s1, 2048, %s17, [#allocation3], 128, 128, 8
    $region9: #{_equal_linear_impl.1} parent=1 // pred_fallthru
      _
    // Predicated region
    $region10: #{_equal_linear_impl.1} parent=1 // pred_check
      _
    $region11: #{_equal_linear_impl.1} parent=1 // pred_check_branch
      %24 = sbr.rel (0) target = $region13
    $region12: #{_equal_linear_impl.1} parent=1 // pred_region
      _
    $region13: #{_equal_linear_impl.1} parent=1 // pred_fallthru
      _
    // Predicated region
    $region14: #{_equal_linear_impl.1} parent=1 // pred_check
      _
    $region15: #{_equal_linear_impl.1} parent=1 // pred_check_branch
      %26 = sbr.rel (0) target = $region17
    $region16: #{_equal_linear_impl.1} parent=1 // pred_region
      %27 = dma.done [#allocation3], 2048
    $region17: #{_equal_linear_impl.1} parent=1 // pred_fallthru
      _
    %v28 = vld [vmem:[%s0] sm:$0xff]
    %v29 = vld [vmem:[#allocation2] sm:$0xff]
    %v30 = vld [vmem:[#allocation2 + $0x8] sm:$0xff]
    %v31 = vld [vmem:[#allocation2 + $0x10] sm:$0xff]
    %v32 = vld [vmem:[#allocation2 + $0x18] sm:$0xff]
    %v33 = vld [vmem:[#allocation2 + $0x20] sm:$0xff]
    %v34 = vld [vmem:[#allocation2 + $0x28] sm:$0xff]
    %v35 = vld [vmem:[#allocation2 + $0x30] sm:$0xff]
    %v36 = vld [vmem:[#allocation2 + $0x38] sm:$0xff]
    %v37 = vld [vmem:[#allocation2 + $0x40] sm:$0xff]
    %v38 = vld [vmem:[#allocation2 + $0x48] sm:$0xff]
    %v39 = vld [vmem:[#allocation2 + $0x50] sm:$0xff]
    %v40 = vld [vmem:[#allocation2 + $0x58] sm:$0xff]
    %v41 = vld [vmem:[#allocation2 + $0x60] sm:$0xff]
    %v42 = vld [vmem:[#allocation2 + $0x68] sm:$0xff]
    %v43 = vld [vmem:[#allocation2 + $0x70] sm:$0xff]
    %v44 = vld [vmem:[#allocation2 + $0x78] sm:$0xff]
    %v45 = vld [vmem:[%s2] sm:$0x1]
    %v47 = vlaneseq
    %v48 = vshrl.u32 %v47, 7
    %v49 = vsub.s32 0, %v48
    %v50 = vrot.slane %v45, %v49
    %52 = vmatprep.subr.mxu0 0.0
    %53 = vmatpush1.msra.mxu0 %v29
    %54 = vmatprep.subr.mxu0 0.0
    %55 = vmatpush1.msra.mxu0 %v30
    %56 = vmatprep.subr.mxu0 0.0
    %57 = vmatpush1.msra.mxu0 %v31
    %58 = vmatprep.subr.mxu0 0.0
    %59 = vmatpush1.msra.mxu0 %v32
    %60 = vmatprep.subr.mxu0 0.0
    %61 = vmatpush1.msra.mxu0 %v33
    %62 = vmatprep.subr.mxu0 0.0
    %63 = vmatpush1.msra.mxu0 %v34
    %64 = vmatprep.subr.mxu0 0.0
    %65 = vmatpush1.msra.mxu0 %v35
    %66 = vmatprep.subr.mxu0 0.0
    %67 = vmatpush1.msra.mxu0 %v36
    %68 = vmatprep.subr.mxu0 0.0
    %69 = vmatpush1.msra.mxu0 %v37
    %70 = vmatprep.subr.mxu0 0.0
    %71 = vmatpush1.msra.mxu0 %v38
    %72 = vmatprep.subr.mxu0 0.0
    %73 = vmatpush1.msra.mxu0 %v39
    %74 = vmatprep.subr.mxu0 0.0
    %75 = vmatpush1.msra.mxu0 %v40
    %76 = vmatprep.subr.mxu0 0.0
    %77 = vmatpush1.msra.mxu0 %v41
    %78 = vmatprep.subr.mxu0 0.0
    %79 = vmatpush1.msra.mxu0 %v42
    %80 = vmatprep.subr.mxu0 0.0
    %81 = vmatpush1.msra.mxu0 %v43
    %82 = vmatprep.subr.mxu0 0.0
    %83 = vmatpush1.msra.mxu0 %v44
    %84 = vmatprep.subr.mxu0 0.0
    %85 = vmatpush1.msra.mxu0 0.0
    %86 = vmatprep.subr.mxu0 0.0
    %87 = vmatpush1.msra.mxu0 0.0
    %88 = vmatprep.subr.mxu0 0.0
    %89 = vmatpush1.msra.mxu0 0.0
    %90 = vmatprep.subr.mxu0 0.0
    %91 = vmatpush1.msra.mxu0 0.0
    %92 = vmatprep.subr.mxu0 0.0
    %93 = vmatpush1.msra.mxu0 0.0
    %94 = vmatprep.subr.mxu0 0.0
    %95 = vmatpush1.msra.mxu0 0.0
    %96 = vmatprep.subr.mxu0 0.0
    %97 = vmatpush1.msra.mxu0 0.0
    %98 = vmatprep.subr.mxu0 0.0
    %99 = vmatpush1.msra.mxu0 0.0
    %100 = vmatprep.subr.mxu0 0.0
    %101 = vmatpush1.msra.mxu0 0.0
    %102 = vmatprep.subr.mxu0 0.0
    %103 = vmatpush1.msra.mxu0 0.0
    %104 = vmatprep.subr.mxu0 0.0
    %105 = vmatpush1.msra.mxu0 0.0
    %106 = vmatprep.subr.mxu0 0.0
    %107 = vmatpush1.msra.mxu0 0.0
    %108 = vmatprep.subr.mxu0 0.0
    %109 = vmatpush1.msra.mxu0 0.0
    %110 = vmatprep.subr.mxu0 0.0
    %111 = vmatpush1.msra.mxu0 0.0
    %112 = vmatprep.subr.mxu0 0.0
    %113 = vmatpush1.msra.mxu0 0.0
    %114 = vmatprep.subr.mxu0 0.0
    %115 = vmatpush1.msra.mxu0 0.0
    %116 = vmatprep.mubr.f32.mxu0 0.0
    %117 = vmatmul.mubr.f32.gmra.mrb[0].mxu0 %v28
    %v118 = vpop.f32.mrb[0].mxu0
    %v119 = vadd.f32 %v50, %v118
    %v120 = vpop.f32.mrb[0].mxu0
    %121 = vdwg.mxu0
    %122 = vst [vmem:[%s3] sm:$0xff] %v119
    // Predicated region
    $region18: #{_equal_linear_impl.1} parent=1 // pred_check
      _
    $region19: #{_equal_linear_impl.1} parent=1 // pred_check_branch
      %124 = sbr.rel (0) target = $region21
    $region20: #{_equal_linear_impl.1} parent=1 // pred_region
      _
    $region21: #{_equal_linear_impl.1} parent=1 // pred_fallthru
      _
    // Predicated region
    $region22: #{_equal_linear_impl.1} parent=1 // pred_check
      _
    $region23: #{_equal_linear_impl.1} parent=1 // pred_check_branch
      %126 = sbr.rel (0) target = $region25
    $region24: #{_equal_linear_impl.1} parent=1 // pred_region
      _
    $region25: #{_equal_linear_impl.1} parent=1 // pred_fallthru
      _
    %127 = vsyncpa [#allocation3], 1

</llo_original>
